<compile_context>
chip_gen: v7x
topology: tpu7x:2x2x1
jax: 0.10.0
libtpu: 0.0.40
codegen_flags: <defaults>
</compile_context>

<pallas_src>
import functools
import math

import jax
import jax.numpy as jnp
from jax.experimental import pallas as pl
from jax.experimental.pallas import tpu as pltpu


def _output_layer_kernel(x_ref, w_ref, b_ref, o_ref, *, c_in, T, N):
    """x_ref: (1, c_in, T, N) VMEM; w_ref: (cls, c_in*T) VMEM;
    b_ref: (cls, 1) VMEM; o_ref: (1, cls, N) VMEM."""
    # Merge (c_in, T) into the contraction axis; N stays on lanes.
    xf = x_ref[0].reshape(c_in * T, N)
    # Single MXU contraction replaces the whole conv.
    y = jnp.dot(w_ref[...], xf, preferred_element_type=jnp.float32)   # (cls, N)
    y = y + b_ref[...]                                                # one bias add
    o_ref[0] = jax.nn.sigmoid(y).astype(o_ref.dtype)


def output_layer_forward(x, w_conv, b_conv):
    """x: (B, c_in, T, N) f32; w_conv: (cls, c_in, T, 1); b_conv: (cls,).
    Returns logits of shape (B*N, cls), matching the PyTorch module."""
    B, c_in, T, N = x.shape
    cls, c_in2, K, kw = w_conv.shape
    assert c_in2 == c_in and K == T and kw == 1

    # Parameter plumbing (plain JAX, one-time): flatten conv weight row-major
    # over (c_in, T) to match the in-kernel reshape of x.
    w2 = jnp.asarray(w_conv, jnp.float32).reshape(cls, c_in * T)
    b2 = jnp.asarray(b_conv, jnp.float32).reshape(cls, 1)

    kernel = functools.partial(_output_layer_kernel, c_in=c_in, T=T, N=N)

    y = pl.pallas_call(
        kernel,
        out_shape=jax.ShapeDtypeStruct((B, cls, N), x.dtype),
        grid_spec=pltpu.PrefetchScalarGridSpec(
            num_scalar_prefetch=0,
            grid=(B,),
            in_specs=[
                pl.BlockSpec((1, c_in, T, N), lambda b: (b, 0, 0, 0)),
                pl.BlockSpec((cls, c_in * T), lambda b: (0, 0)),  # VMEM-resident
                pl.BlockSpec((cls, 1), lambda b: (0, 0)),         # VMEM-resident
            ],
            out_specs=pl.BlockSpec((1, cls, N), lambda b: (b, 0, 0)),
        ),
        compiler_params=pltpu.CompilerParams(
            dimension_semantics=("parallel",)),   # both TCs on v7x
    )(x, w2, b2)

    # .squeeze().permute(0, 2, 1).reshape(-1, cls): pure layout, done outside.
    # TODO(synk): torch's .squeeze() would also drop the batch dim when B == 1;
    #             we assume B > 1 (as in the provided x_shape).
    return jnp.transpose(y, (0, 2, 1)).reshape(-1, cls)


if __name__ == "__main__":
    # Shapes consistent with x_shape = [batch, c_in, T_slot, n_node].
    B, c_in, T, N = 2, 4, 16, 16
    cls = 8

    key = jax.random.PRNGKey(0)
    kx, kw, kb = jax.random.split(key, 3)

    x = jax.random.normal(kx, (B, c_in, T, N), dtype=jnp.float32)

    # Deterministic PyTorch-style Conv2d init (bound = 1/sqrt(fan_in)).
    bound = 1.0 / math.sqrt(c_in * T * 1)
    w_conv = jax.random.uniform(kw, (cls, c_in, T, 1), jnp.float32, -bound, bound)
    b_conv = jax.random.uniform(kb, (cls,), jnp.float32, -bound, bound)

    out = jax.block_until_ready(output_layer_forward(x, w_conv, b_conv))

    # Pure-JAX reference (same math as the PyTorch forward).
    yref = jnp.einsum('oit,bitn->bon', w_conv[..., 0], x,
                      precision=jax.lax.Precision.HIGHEST) \
        + b_conv[None, :, None]
    ref = jax.nn.sigmoid(jnp.transpose(yref, (0, 2, 1)).reshape(-1, cls))

    assert out.shape == (B * N, cls)
    assert jnp.allclose(out, ref, atol=1e-5, rtol=1e-5), \
        float(jnp.max(jnp.abs(out - ref)))
    print("KERNEL_OK")
</pallas_src>

<mosaic_0001>
module attributes {stable_mosaic.version = 11 : i64} {
  func.func @_output_layer_kernel(%arg0: i32, %arg1: memref<1x4x16x16xf32, #tpu.memory_space<vmem>>, %arg2: memref<8x64xf32, #tpu.memory_space<vmem>>, %arg3: memref<8x1xf32, #tpu.memory_space<vmem>>, %arg4: memref<1x8x16xf32, #tpu.memory_space<vmem>>) attributes {dimension_semantics = [#tpu.dimension_semantics<parallel>], iteration_bounds = array<i64: 2>, scalar_prefetch = 0 : i64, scratch_operands = 0 : i64, tpu.core_type = #tpu.core_type<tc>, window_params = [{transform_indices = @transform_0, window_bounds = array<i64: 1, 4, 16, 16>}, {pipeline_mode = #tpu.pipeline_mode<synchronous>, transform_indices = @transform_1, window_bounds = array<i64: 8, 64>}, {pipeline_mode = #tpu.pipeline_mode<synchronous>, transform_indices = @transform_2, window_bounds = array<i64: 8, 1>}, {transform_indices = @transform_3, window_bounds = array<i64: 1, 8, 16>}]} {
    %c0 = arith.constant 0 : index
    %c0_0 = arith.constant 0 : index
    %c0_1 = arith.constant 0 : index
    %c0_2 = arith.constant 0 : index
    %0 = vector.load %arg1[%c0, %c0_0, %c0_1, %c0_2] : memref<1x4x16x16xf32, #tpu.memory_space<vmem>>, vector<1x4x16x16xf32>
    %1 = vector.shape_cast %0 : vector<1x4x16x16xf32> to vector<4x16x16xf32>
    %2 = vector.shape_cast %1 : vector<4x16x16xf32> to vector<64x16xf32>
    %c0_3 = arith.constant 0 : index
    %c0_4 = arith.constant 0 : index
    %3 = vector.load %arg2[%c0_3, %c0_4] : memref<8x64xf32, #tpu.memory_space<vmem>>, vector<8x64xf32>
    %cst = arith.constant dense<0.000000e+00> : vector<8x16xf32>
    %4 = tpu.matmul %3, %2, %cst {dimension_numbers = #tpu.dot_dimension_numbers<[1], [0], [0], [1], [0, 0, 1, 1], [], []>} : vector<8x64xf32>, vector<64x16xf32>, vector<8x16xf32> -> vector<8x16xf32>
    %c0_5 = arith.constant 0 : index
    %c0_6 = arith.constant 0 : index
    %5 = vector.load %arg3[%c0_5, %c0_6] : memref<8x1xf32, #tpu.memory_space<vmem>>, vector<8x1xf32>
    %6 = vector.broadcast %5 : vector<8x1xf32> to vector<8x16xf32>
    %7 = arith.addf %4, %6 : vector<8x16xf32>
    %8 = arith.negf %7 : vector<8x16xf32>
    %9 = math.exp %8 : vector<8x16xf32>
    %cst_7 = arith.constant 1.000000e+00 : f32
    %10 = vector.broadcast %cst_7 : f32 to vector<8x16xf32>
    %11 = arith.addf %10, %9 : vector<8x16xf32>
    %12 = arith.divf %10, %11 : vector<8x16xf32>
    %c0_8 = arith.constant 0 : index
    %c0_9 = arith.constant 0 : index
    %c0_10 = arith.constant 0 : index
    %13 = vector.load %arg4[%c0_8, %c0_9, %c0_10] : memref<1x8x16xf32, #tpu.memory_space<vmem>>, vector<1x8x16xf32>
    %14 = vector.shape_cast %13 : vector<1x8x16xf32> to vector<8x16xf32>
    %15 = vector.shape_cast %12 : vector<8x16xf32> to vector<1x8x16xf32>
    tpu.vector_store %arg4[%c0_8, %c0_9, %c0_10], %15 {strides = array<i32>} : memref<1x8x16xf32, #tpu.memory_space<vmem>>, vector<1x8x16xf32>,
    return
  }
  func.func @transform_0(%arg0: i32) -> (i32, i32, i32, i32) {
    %c0_i32 = arith.constant 0 : i32
    %c0_i32_0 = arith.constant 0 : i32
    %c0_i32_1 = arith.constant 0 : i32
    %c0_i32_2 = arith.constant 0 : i32
    return %arg0, %c0_i32, %c0_i32_0, %c0_i32_1 : i32, i32, i32, i32
  }
  func.func @transform_1(%arg0: i32) -> (i32, i32) {
    %c0_i32 = arith.constant 0 : i32
    %c0_i32_0 = arith.constant 0 : i32
    %c0_i32_1 = arith.constant 0 : i32
    return %c0_i32, %c0_i32_0 : i32, i32
  }
  func.func @transform_2(%arg0: i32) -> (i32, i32) {
    %c0_i32 = arith.constant 0 : i32
    %c0_i32_0 = arith.constant 0 : i32
    %c0_i32_1 = arith.constant 0 : i32
    return %c0_i32, %c0_i32_0 : i32, i32
  }
  func.func @transform_3(%arg0: i32) -> (i32, i32, i32) {
    %c0_i32 = arith.constant 0 : i32
    %c0_i32_0 = arith.constant 0 : i32
    %c0_i32_1 = arith.constant 0 : i32
    return %arg0, %c0_i32, %c0_i32_0 : i32, i32, i32
  }
}

</mosaic_0001>

<llo_original>
// kernel: tpu_custom_call.1
$region0: #{tpu_custom_call.1}
  #allocation0 [shape = 'u32[]', space=smem, size = 0x4, offset = 0x4, fixed_abs, tag = 'smem constant byte address 0x4 - core index']
  #allocation1 [shape = 'u32[144,128]{1,0:T(1,128)}', space=vmem, size = 0x12000, scoped, tag = 'internal scratch']
  %s0 = inlined_call_operand.hbm [shape: f32[2,4,16,16], index: 0, kind: input, shape index: {}]
  %s1 = inlined_call_operand.vmem [shape: f32[8,64], index: 1, kind: input, shape index: {}]
  %s2 = inlined_call_operand.vmem [shape: f32[8,1], index: 2, kind: input, shape index: {}]
  %s3 = inlined_call_operand.hbm [shape: f32[2,8,16], index: 3, kind: output, shape index: {}]
  %s4 = sld [smem:[#allocation0]]
  $region49: #{tpu_custom_call.1} parent=0
    _
  %s6 = ssub.s32 1, %s4
  %s7 = scalar_select 0, %s6, %s4
  $region1: #{tpu_custom_call.1} parent=0
    #allocation2 [shape = 'u8[65536]{0}', space=vmem, size = 0x10000, scoped, tag = 'input window, operand 0']
    #allocation3 [shape = 's32[2]{0}', space=sflag, size = 0x8, scoped, tag = 'scoped memory for tpu_custom_call.1']
    #allocation4 [shape = 's32[2]{0}', space=sflag, size = 0x8, scoped, tag = 'scoped memory for tpu_custom_call.1']
    #allocation5 [shape = 'u8[8192]{0}', space=vmem, size = 0x2000, scoped, tag = 'output window, operand 0']
    %8 = vsyncpa [#allocation3], 0
    %s9 = scalar_lea.sflag [#allocation3], 1
    %10 = vsyncpa %s9, 0
    %11 = vsyncpa [#allocation4], 0
    %s12 = scalar_lea.sflag [#allocation4], 1
    %13 = vsyncpa %s12, 0
    loop: start=0, step=1, limit=4
    $region2: #{tpu_custom_call.1} parent=1 // loop_pre_header
      _
    $region3: #{tpu_custom_call.1} parent=1 // loop_header
      %s15 = sphi 0, %s19
      %p16 = scmp.ge.s32.totalorder %s15, 4
      %s25 = sphi 0, %s27
      %s28 = sphi 0, %s25
      %s29 = sphi 0, %s28
      %s45 = sphi 0, %s29
      %s49 = sphi 0, %s49
      %s51 = sphi 0, %s49
      %s52 = sphi 0, %s51
      %s66 = sphi 0, %s52
      %s70 = sphi 0, %s70
      %s72 = sphi 0, %s70
      %s73 = sphi 0, %s72
      %s87 = sphi 0, %s73
      %s93 = sphi 0, %s95
      %s96 = sphi 0, %s93
      %s97 = sphi 0, %s96
      %s113 = sphi 0, %s97
    $region4: #{tpu_custom_call.1} parent=1 // loop_header_branch
      %18 = sbr.rel (%p16) target = $region8
    $region5: #{tpu_custom_call.1} parent=1 // loop_body
      %s20 = ssub.s32 %s15, 1
      %s21 = ssub.s32 %s15, 2
      %s22 = sadd.s32 %s15, 1
      %s23 = ssub.s32 %s15, %s22
      %p24 = scmp.eq.s32.totalorder %s23, 0
      %s26 = sadd.s32 %s25, 1
      %s27 = scalar_select %p24, %s25, %s26
      %p30 = pneg %p24
      %p31 = scmp.eq.s32.totalorder %s15, 1
      %p32 = por %p30, %p31
      %p33 = scmp.ne.s32.totalorder %s25, %s28
      %p34 = scmp.eq.s32.totalorder %s15, 0
      %p35 = por %p33, %p34
      %p36 = scmp.ne.s32.totalorder %s25, %s28
      %p37 = scmp.eq.s32.totalorder %s20, 1
      %p38 = por %p36, %p37
      %p39 = scmp.ne.s32.totalorder %s28, %s29
      %p40 = scmp.eq.s32.totalorder %s20, 0
      %p41 = por %p39, %p40
      %p42 = scmp.ne.s32.totalorder %s28, %s29
      %p43 = scmp.eq.s32.totalorder %s21, 1
      %p44 = por %p42, %p43
      %p46 = scmp.ne.s32.totalorder %s29, %s45
      %p47 = scmp.eq.s32.totalorder %s21, 0
      %p48 = por %p46, %p47
      %s50 = sadd.s32 %s49, 1
      %p53 = scmp.eq.s32.totalorder %s15, 1
      %p54 = scmp.ne.s32.totalorder %s49, %s51
      %p55 = scmp.eq.s32.totalorder %s15, 0
      %p56 = por %p54, %p55
      %p57 = scmp.ne.s32.totalorder %s49, %s51
      %p58 = scmp.eq.s32.totalorder %s20, 1
      %p59 = por %p57, %p58
      %p60 = scmp.ne.s32.totalorder %s51, %s52
      %p61 = scmp.eq.s32.totalorder %s20, 0
      %p62 = por %p60, %p61
      %p63 = scmp.ne.s32.totalorder %s51, %s52
      %p64 = scmp.eq.s32.totalorder %s21, 1
      %p65 = por %p63, %p64
      %p67 = scmp.ne.s32.totalorder %s52, %s66
      %p68 = scmp.eq.s32.totalorder %s21, 0
      %p69 = por %p67, %p68
      %s71 = sadd.s32 %s70, 1
      %p74 = scmp.eq.s32.totalorder %s15, 1
      %p75 = scmp.ne.s32.totalorder %s70, %s72
      %p76 = scmp.eq.s32.totalorder %s15, 0
      %p77 = por %p75, %p76
      %p78 = scmp.ne.s32.totalorder %s70, %s72
      %p79 = scmp.eq.s32.totalorder %s20, 1
      %p80 = por %p78, %p79
      %p81 = scmp.ne.s32.totalorder %s72, %s73
      %p82 = scmp.eq.s32.totalorder %s20, 0
      %p83 = por %p81, %p82
      %p84 = scmp.ne.s32.totalorder %s72, %s73
      %p85 = scmp.eq.s32.totalorder %s21, 1
      %p86 = por %p84, %p85
      %p88 = scmp.ne.s32.totalorder %s73, %s87
      %p89 = scmp.eq.s32.totalorder %s21, 0
      %p90 = por %p88, %p89
      %s91 = ssub.s32 %s15, %s22
      %p92 = scmp.eq.s32.totalorder %s91, 0
      %s94 = sadd.s32 %s93, 1
      %s95 = scalar_select %p92, %s93, %s94
      %p98 = pneg %p92
      %p99 = scmp.eq.s32.totalorder %s15, 1
      %p100 = por %p98, %p99
      %p101 = scmp.ne.s32.totalorder %s93, %s96
      %p102 = scmp.eq.s32.totalorder %s15, 0
      %p103 = por %p101, %p102
      %p104 = scmp.ne.s32.totalorder %s93, %s96
      %p105 = scmp.eq.s32.totalorder %s20, 1
      %p106 = por %p104, %p105
      %p107 = scmp.ne.s32.totalorder %s96, %s97
      %p108 = scmp.eq.s32.totalorder %s20, 0
      %p109 = por %p107, %p108
      %p110 = scmp.ne.s32.totalorder %s96, %s97
      %p111 = scmp.eq.s32.totalorder %s21, 1
      %p112 = por %p110, %p111
      %p114 = scmp.ne.s32.totalorder %s97, %s113
      %p115 = scmp.eq.s32.totalorder %s21, 0
      %p116 = por %p114, %p115
      %p117 = scmp.le.s32.totalorder 1, %s15
      %p118 = scmp.lt.s32.totalorder %s15, 3
      %p119 = pnand %p117, %p118
      %p120 = pneg %p119
      // Predicated region
      $region9: #{tpu_custom_call.1} parent=5 // pred_check
        _
      $region10: #{tpu_custom_call.1} parent=5 // pred_check_branch
        %122 = sbr.rel (%p119) target = $region12
      $region11: #{tpu_custom_call.1} parent=5 // pred_region
        %s123 = ssub.s32 %s15, 1
        // Predicated region
        $region13: #{tpu_custom_call.1} parent=11 // pred_check
          %p124 = pneg %p62
        $region14: #{tpu_custom_call.1} parent=11 // pred_check_branch
          %126 = sbr.rel (%p124) target = $region16
        $region15: #{tpu_custom_call.1} parent=11 // pred_region
          _
        $region16: #{tpu_custom_call.1} parent=11 // pred_fallthru
          _
        // Predicated region
        $region17: #{tpu_custom_call.1} parent=11 // pred_check
          %p127 = pneg %p83
        $region18: #{tpu_custom_call.1} parent=11 // pred_check_branch
          %129 = sbr.rel (%p127) target = $region20
        $region19: #{tpu_custom_call.1} parent=11 // pred_region
          _
        $region20: #{tpu_custom_call.1} parent=11 // pred_fallthru
          _
      $region12: #{tpu_custom_call.1} parent=5 // pred_fallthru
        _
      %p130 = scmp.lt.s32.totalorder %s15, 2
      // Predicated region
      $region21: #{tpu_custom_call.1} parent=5 // pred_check
        %p131 = pneg %p130
      $region22: #{tpu_custom_call.1} parent=5 // pred_check_branch
        %133 = sbr.rel (%p131) target = $region24
      $region23: #{tpu_custom_call.1} parent=5 // pred_region
        // Predicated region
        $region25: #{tpu_custom_call.1} parent=23 // pred_check
          %p134 = pneg %p35
        $region26: #{tpu_custom_call.1} parent=23 // pred_check_branch
          %136 = sbr.rel (%p134) target = $region28
        $region27: #{tpu_custom_call.1} parent=23 // pred_region
          %s137 = sand.u32 %s25, 1
          %s138 = scalar_lea.sflag [#allocation3], %s137
          %s139 = sand.u32 %s25, 1
          %s140 = smul.addr %s139, 64
          %s141 = scalar_lea.vmem [#allocation2], %s140
          %s143 = ssub.s32 1024, 1024
          %144 = vsyncadd %s138, %s143
          %s145 = smul.addr %s15, 8
          %s146 = smul.addr %s145, 128
          %s147 = scalar_lea.hbm %s0, %s146
          %s148 = sshll.u32 %s141, 4
          %s149 = int_to_ptr.vmem [resolvable:$true] %s148
          %154 = dma.hbm_to_vmem [thread:$0]  %s147, 1024, %s149, %s138, 128, 128, 8
        $region28: #{tpu_custom_call.1} parent=23 // pred_fallthru
          _
      $region24: #{tpu_custom_call.1} parent=5 // pred_fallthru
        _
      %p155 = scmp.le.s32.totalorder 1, %s15
      %p156 = scmp.lt.s32.totalorder %s15, 3
      %p157 = pnand %p155, %p156
      %p158 = pneg %p157
      // Predicated region
      $region29: #{tpu_custom_call.1} parent=5 // pred_check
        _
      $region30: #{tpu_custom_call.1} parent=5 // pred_check_branch
        %160 = sbr.rel (%p157) target = $region32
      $region31: #{tpu_custom_call.1} parent=5 // pred_region
        %s161 = ssub.s32 %s15, 1
        %s162 = sand.u32 %s28, 1
        %s163 = scalar_lea.sflag [#allocation3], %s162
        %s164 = sand.u32 %s28, 1
        %s165 = smul.addr %s164, 64
        %s166 = scalar_lea.vmem [#allocation2], %s165
        // Predicated region
        $region33: #{tpu_custom_call.1} parent=31 // pred_check
          %p167 = pneg %p41
        $region34: #{tpu_custom_call.1} parent=31 // pred_check_branch
          %169 = sbr.rel (%p167) target = $region36
        $region35: #{tpu_custom_call.1} parent=31 // pred_region
          %170 = dma.done %s163, 1024
        $region36: #{tpu_custom_call.1} parent=31 // pred_fallthru
          _
        %s171 = sand.u32 %s28, 1
        %s172 = scalar_lea.sflag [#allocation3], %s171
        %s173 = sand.u32 %s28, 1
        %s174 = smul.addr %s173, 64
        %s175 = scalar_lea.vmem [#allocation2], %s174
        %p176 = pneg %p41
        %p177 = pneg %p38
        %p178 = pneg %p62
        %p179 = pneg %p59
        %p180 = pneg %p83
        %p181 = pneg %p80
        %p182 = pneg %p109
        %p183 = pneg %p106
        %s184 = sand.u32 %s96, 1
        %s185 = scalar_lea.sflag [#allocation4], %s184
        %s186 = sand.u32 %s96, 1
        %s187 = smul.addr %s186, 8
        %s188 = scalar_lea.vmem [#allocation5], %s187
        %v189 = vld [vmem:[%s166] sm:$0xff]
        %v190 = vld [vmem:[%s166 + $0x8] sm:$0xff]
        %v191 = vld [vmem:[%s166 + $0x10] sm:$0xff]
        %v192 = vld [vmem:[%s166 + $0x18] sm:$0xff]
        %v193 = vld [vmem:[%s166 + $0x20] sm:$0xff]
        %v194 = vld [vmem:[%s166 + $0x28] sm:$0xff]
        %v195 = vld [vmem:[%s166 + $0x30] sm:$0xff]
        %v196 = vld [vmem:[%s166 + $0x38] sm:$0xff]
        %v197 = vld [vmem:[%s1] sm:$0xff]
        %v198 = vld [vmem:[%s2] sm:$0xff]
        %200 = vset.pattern.permute.xlu0 0
        %201 = vperm.xlu0 %200, %v198
        %v202 = vpop.permute.xlu0 %201
        %vm204 = vcmask 523264
        %v206 = vsel %vm204, %v197, 0
        %208 = vmatprep.subr.mxu0 0.0
        %209 = vmatpush1.msra.mxu0 %v189
        %210 = vmatprep.subr.mxu0 0.0
        %211 = vmatpush1.msra.mxu0 %v190
        %212 = vmatprep.subr.mxu0 0.0
        %213 = vmatpush1.msra.mxu0 %v191
        %214 = vmatprep.subr.mxu0 0.0
        %215 = vmatpush1.msra.mxu0 %v192
        %216 = vmatprep.subr.mxu0 0.0
        %217 = vmatpush1.msra.mxu0 %v193
        %218 = vmatprep.subr.mxu0 0.0
        %219 = vmatpush1.msra.mxu0 %v194
        %220 = vmatprep.subr.mxu0 0.0
        %221 = vmatpush1.msra.mxu0 %v195
        %222 = vmatprep.subr.mxu0 0.0
        %223 = vmatpush1.msra.mxu0 %v196
        %224 = vmatprep.subr.mxu0 0.0
        %225 = vmatpush1.msra.mxu0 0.0
        %226 = vmatprep.subr.mxu0 0.0
        %227 = vmatpush1.msra.mxu0 0.0
        %228 = vmatprep.subr.mxu0 0.0
        %229 = vmatpush1.msra.mxu0 0.0
        %230 = vmatprep.subr.mxu0 0.0
        %231 = vmatpush1.msra.mxu0 0.0
        %232 = vmatprep.subr.mxu0 0.0
        %233 = vmatpush1.msra.mxu0 0.0
        %234 = vmatprep.subr.mxu0 0.0
        %235 = vmatpush1.msra.mxu0 0.0
        %236 = vmatprep.subr.mxu0 0.0
        %237 = vmatpush1.msra.mxu0 0.0
        %238 = vmatprep.subr.mxu0 0.0
        %239 = vmatpush1.msra.mxu0 0.0
        %240 = vmatprep.subr.mxu0 0.0
        %241 = vmatpush1.msra.mxu0 0.0
        %242 = vmatprep.subr.mxu0 0.0
        %243 = vmatpush1.msra.mxu0 0.0
        %244 = vmatprep.subr.mxu0 0.0
        %245 = vmatpush1.msra.mxu0 0.0
        %246 = vmatprep.subr.mxu0 0.0
        %247 = vmatpush1.msra.mxu0 0.0
        %248 = vmatprep.subr.mxu0 0.0
        %249 = vmatpush1.msra.mxu0 0.0
        %250 = vmatprep.subr.mxu0 0.0
        %251 = vmatpush1.msra.mxu0 0.0
        %252 = vmatprep.subr.mxu0 0.0
        %253 = vmatpush1.msra.mxu0 0.0
        %254 = vmatprep.subr.mxu0 0.0
        %255 = vmatpush1.msra.mxu0 0.0
        %256 = vmatprep.subr.mxu0 0.0
        %257 = vmatpush1.msra.mxu0 0.0
        %258 = vmatprep.subr.mxu0 0.0
        %259 = vmatpush1.msra.mxu0 0.0
        %260 = vmatprep.subr.mxu0 0.0
        %261 = vmatpush1.msra.mxu0 0.0
        %262 = vmatprep.subr.mxu0 0.0
        %263 = vmatpush1.msra.mxu0 0.0
        %264 = vmatprep.subr.mxu0 0.0
        %265 = vmatpush1.msra.mxu0 0.0
        %266 = vmatprep.subr.mxu0 0.0
        %267 = vmatpush1.msra.mxu0 0.0
        %268 = vmatprep.subr.mxu0 0.0
        %269 = vmatpush1.msra.mxu0 0.0
        %270 = vmatprep.subr.mxu0 0.0
        %271 = vmatpush1.msra.mxu0 0.0
        %272 = vmatprep.mubr.f32.mxu0 0.0
        %273 = vmatmul.mubr.f32.gmra.mrb[0].mxu0 %v206
        %v274 = vpop.f32.mrb[0].mxu0
        %v275 = vadd.f32 %v202, %v274
        %v276 = vpop.f32.mrb[0].mxu0
        %277 = vdwg.mxu0
        %v278 = vxor.u32 %v275, 2147483648
        %v279 = vmul.f32 %v278, 1.442695
        %v280 = vpow.pop %v279
        %v281 = vadd.f32 %v280, 1.0
        %v282 = vrcp.pop %v281
        %v283 = vmul.f32 1.0, %v282
        %vm284 = vcmask 130048
        %285 = vst.msk [vmem:[%s188] sm:$0xff] %vm284, %v283
        %s286 = sand.u32 %s96, 1
        %s287 = scalar_lea.sflag [#allocation4], %s286
        %s288 = sand.u32 %s96, 1
        %s289 = smul.addr %s288, 8
        %s290 = scalar_lea.vmem [#allocation5], %s289
        // Predicated region
        $region37: #{tpu_custom_call.1} parent=31 // pred_check
          %p291 = pneg %p106
        $region38: #{tpu_custom_call.1} parent=31 // pred_check_branch
          %293 = sbr.rel (%p291) target = $region40
        $region39: #{tpu_custom_call.1} parent=31 // pred_region
          %s295 = ssub.s32 128, 128
          %296 = vsyncadd %s287, %s295
          %s297 = smul.addr %s20, 128
          %s298 = scalar_lea.hbm %s3, %s297
          %s300 = sshll.u32 %s290, 4
          %s301 = int_to_ptr.vmem [resolvable:$true] %s300
          %303 = dma.vmem_to_hbm [thread:$0]  %s301, 128, %s298, %s287
        $region40: #{tpu_custom_call.1} parent=31 // pred_fallthru
          _
      $region32: #{tpu_custom_call.1} parent=5 // pred_fallthru
        _
      %p304 = scmp.le.s32.totalorder 2, %s15
      // Predicated region
      $region41: #{tpu_custom_call.1} parent=5 // pred_check
        %p305 = pneg %p304
      $region42: #{tpu_custom_call.1} parent=5 // pred_check_branch
        %307 = sbr.rel (%p305) target = $region44
      $region43: #{tpu_custom_call.1} parent=5 // pred_region
        %s308 = ssub.s32 %s15, 2
        // Predicated region
        $region45: #{tpu_custom_call.1} parent=43 // pred_check
          %p309 = pneg %p112
        $region46: #{tpu_custom_call.1} parent=43 // pred_check_branch
          %311 = sbr.rel (%p309) target = $region48
        $region47: #{tpu_custom_call.1} parent=43 // pred_region
          %s312 = sand.u32 %s97, 1
          %s313 = scalar_lea.sflag [#allocation4], %s312
          %s314 = sand.u32 %s97, 1
          %s315 = smul.addr %s314, 8
          %s316 = scalar_lea.vmem [#allocation5], %s315
          %317 = dma.done %s313, 128
        $region48: #{tpu_custom_call.1} parent=43 // pred_fallthru
          _
      $region44: #{tpu_custom_call.1} parent=5 // pred_fallthru
        _
    $region6: #{tpu_custom_call.1} parent=1 // loop_footer
      %s19 = sadd.s32 1, %s15
    $region7: #{tpu_custom_call.1} parent=1 // loop_footer_branch
      %14 = sbr.rel target = $region3
    $region8: #{tpu_custom_call.1} parent=1 // loop_exit
      _
    %318 = vsyncpa [#allocation3], 1
    %s319 = scalar_lea.sflag [#allocation3], 1
    %320 = vsyncpa %s319, 1
    %321 = vsyncpa [#allocation4], 1
    %s322 = scalar_lea.sflag [#allocation4], 1
    %323 = vsyncpa %s322, 1

</llo_original>
